<compile_context>
chip_gen: v5e
topology: v5e:2x2
jax: 0.10.0
libtpu: 0.0.40
codegen_flags: <defaults>
</compile_context>

<pallas_src>
import functools
import math

import jax
import jax.numpy as jnp
from jax import lax
from jax.experimental import pallas as pl
from jax.experimental.pallas import tpu as pltpu


def _vmem_budget():
    """Generation-aware scoped-VMEM limit and working budget for tile sizing."""
    try:
        cap = pltpu.get_tpu_info().vmem_capacity_bytes
    except Exception:
        cap = 64 * 1024 * 1024          # conservative default (v7x per-TC VMEM)
    limit = min((cap * 5) // 8, 80 * 1024 * 1024)   # ~40 MiB on v7x, 80 MiB on v5e/v6e
    return int(limit), int(limit) // 2


_VMEM_LIMIT_BYTES, _TILE_VMEM_BUDGET = _vmem_budget()


# ---------------------------------------------------------------------------
# Linear:  y = x @ W.T + b   (torch.nn.Linear weight layout: (out, in), kept as-is)
# ---------------------------------------------------------------------------
def _pick_k_tile(k):
    if k <= 512:
        return k
    for tk in (512, 256, 128):
        if k % tk == 0:
            return tk
    return k                              # odd K: single K step (still correct)


def _pick_row_tile(rows, tk, n, itemsize):
    if rows <= 8:
        return rows                       # tiny row count: one full (legal) block
    fixed = 2 * (n * tk * itemsize) + 2 * (n * 4)        # weight + bias (double-buffered)

    def cost(bm):
        c = fixed
        c += 2 * bm * tk * itemsize       # x tile (double-buffered)
        c += 2 * bm * n * itemsize        # out tile (double-buffered)
        c += bm * n * 4                   # f32 accumulator scratch
        return c

    for bm in (1024, 512, 256, 128, 64, 32, 16, 8):
        if bm <= rows and cost(bm) <= _TILE_VMEM_BUDGET:
            return bm
    return 8


def _linear_kernel(x_ref, w_ref, b_ref, o_ref, acc_ref):
    # x: (bm, tk)   w: (N, tk)   -> contract last dims (no weight transpose anywhere)
    @pl.when(pl.program_id(1) == 0)
    def _():
        acc_ref[...] = jnp.zeros_like(acc_ref)

    acc_ref[...] += lax.dot_general(
        x_ref[...], w_ref[...],
        dimension_numbers=(((1,), (1,)), ((), ())),
        preferred_element_type=jnp.float32)

    @pl.when(pl.program_id(1) == pl.num_programs(1) - 1)
    def _():
        o_ref[...] = (acc_ref[...] + b_ref[...].astype(jnp.float32)).astype(o_ref.dtype)


def linear_pallas(x2d, weight, bias):
    rows, in_features = x2d.shape
    out_features = weight.shape[0]
    tk = _pick_k_tile(in_features)
    bm = _pick_row_tile(rows, tk, out_features, x2d.dtype.itemsize)
    b2d = bias.reshape(1, out_features)

    return pl.pallas_call(
        _linear_kernel,
        out_shape=jax.ShapeDtypeStruct((rows, out_features), x2d.dtype),
        grid_spec=pltpu.PrefetchScalarGridSpec(
            num_scalar_prefetch=0,
            grid=(pl.cdiv(rows, bm), in_features // tk),
            in_specs=[
                pl.BlockSpec((bm, tk), lambda i, kk: (i, kk)),
                pl.BlockSpec((out_features, tk), lambda i, kk: (0, kk)),
                pl.BlockSpec((1, out_features), lambda i, kk: (0, 0)),
            ],
            out_specs=pl.BlockSpec((bm, out_features), lambda i, kk: (i, 0)),
            scratch_shapes=[pltpu.VMEM((bm, out_features), jnp.float32)],
        ),
        compiler_params=pltpu.CompilerParams(
            dimension_semantics=("parallel", "arbitrary"),
            vmem_limit_bytes=_VMEM_LIMIT_BYTES,
        ),
    )(x2d, weight, b2d)


# ---------------------------------------------------------------------------
# Scaled dot-product attention, head-interleaved (B, L, h, d_k) layout
# ---------------------------------------------------------------------------
def _pick_q_tile(Lq, Lk, h, d_k, itemsize):
    d_model = h * d_k
    fixed = 2 * (2 * Lk * d_model * itemsize)            # k + v blocks (double-buffered)

    def cost(tq):
        c = fixed
        c += 2 * (2 * tq * d_model * itemsize)           # q + out blocks (double-buffered)
        c += 2 * (h * tq * Lk * itemsize)                # p_attn out block (double-buffered)
        c += 2 * (tq * Lk * 4)                           # mask block (int32, double-buffered)
        c += 6 * (tq * Lk * 4)                           # f32 score/exp temporaries
        return c

    if Lq <= 512 and cost(Lq) <= _TILE_VMEM_BUDGET:
        return Lq
    for tq in (512, 256, 128, 64, 32, 16, 8):
        if tq < Lq and cost(tq) <= _TILE_VMEM_BUDGET:
            return tq
    return min(Lq, 8)


def _attention_body(q_ref, k_ref, v_ref, o_ref, p_ref, mask, scale):
    n_heads = q_ref.shape[2]
    for hh in range(n_heads):                            # static unroll over heads
        q_h = q_ref[0, :, hh, :]                         # (tq, d_k) native dtype -> MXU
        k_h = k_ref[0, :, hh, :]                         # (Lk, d_k)
        v_h = v_ref[0, :, hh, :]                         # (Lk, d_k)
        # scores = q @ k^T without materializing a transpose (contract last dims).
        s = lax.dot_general(q_h, k_h,
                            dimension_numbers=(((1,), (1,)), ((), ())),
                            preferred_element_type=jnp.float32)
        s = s * jnp.float32(scale)
        if mask is not None:
            s = jnp.where(mask == 0, jnp.float32(-1e9), s)
        m = jnp.max(s, axis=-1, keepdims=True)
        e = jnp.exp(s - m)
        p = e / jnp.sum(e, axis=-1, keepdims=True)       # exact softmax (torch parity)
        out_h = jnp.dot(p.astype(v_h.dtype), v_h, preferred_element_type=jnp.float32)
        o_ref[0, :, hh, :] = out_h.astype(o_ref.dtype)
        p_ref[0, hh, :, :] = p.astype(p_ref.dtype)


def _attention_kernel(q_ref, k_ref, v_ref, o_ref, p_ref, *, scale):
    _attention_body(q_ref, k_ref, v_ref, o_ref, p_ref, None, scale)


def _attention_kernel_masked(q_ref, k_ref, v_ref, m_ref, o_ref, p_ref, *, scale):
    mask = m_ref[0, 0]                                   # (tq, Lk), shared across heads
    _attention_body(q_ref, k_ref, v_ref, o_ref, p_ref, mask, scale)


def scaled_dot_product_attention_pallas(q, k, v, mask=None):
    """q, k, v: (B, L, h, d_k).  mask: (1 or B, 1, Lq, Lk) int32 (0 = masked) or None.

    Returns (out, p_attn) with out in (B, Lq, h, d_k) and p_attn in (B, h, Lq, Lk).
    """
    B, Lq, h, d_k = q.shape
    Lk = k.shape[1]
    scale = 1.0 / math.sqrt(d_k)
    tq = _pick_q_tile(Lq, Lk, h, d_k, q.dtype.itemsize)

    in_specs = [
        pl.BlockSpec((1, tq, h, d_k), lambda b, qi: (b, qi, 0, 0)),
        pl.BlockSpec((1, Lk, h, d_k), lambda b, qi: (b, 0, 0, 0)),   # fetched once per b
        pl.BlockSpec((1, Lk, h, d_k), lambda b, qi: (b, 0, 0, 0)),
    ]
    out_specs = [
        pl.BlockSpec((1, tq, h, d_k), lambda b, qi: (b, qi, 0, 0)),
        pl.BlockSpec((1, h, tq, Lk), lambda b, qi: (b, 0, qi, 0)),
    ]
    out_shape = (
        jax.ShapeDtypeStruct((B, Lq, h, d_k), q.dtype),
        jax.ShapeDtypeStruct((B, h, Lq, Lk), q.dtype),
    )

    if mask is None:
        kernel = functools.partial(_attention_kernel, scale=scale)
        args = (q, k, v)
    else:
        kernel = functools.partial(_attention_kernel_masked, scale=scale)
        if mask.shape[0] == 1:
            mask_map = lambda b, qi: (0, 0, qi, 0)       # shared mask: no B x re-read
        else:
            mask_map = lambda b, qi: (b, 0, qi, 0)
        in_specs.append(pl.BlockSpec((1, 1, tq, Lk), mask_map))
        args = (q, k, v, mask)

    out, p_attn = pl.pallas_call(
        kernel,
        out_shape=out_shape,
        grid_spec=pltpu.PrefetchScalarGridSpec(
            num_scalar_prefetch=0,
            grid=(B, pl.cdiv(Lq, tq)),
            in_specs=in_specs,
            out_specs=out_specs,
        ),
        compiler_params=pltpu.CompilerParams(
            dimension_semantics=("parallel", "parallel"),
            vmem_limit_bytes=_VMEM_LIMIT_BYTES,
        ),
    )(*args)
    return out, p_attn


# ---------------------------------------------------------------------------
# Full MultiHeadedAttention forward
# ---------------------------------------------------------------------------
def multi_headed_attention_pallas(query, key, value, params, h, d_k, mask=None):
    """Matches MultiHeadedAttention.forward (dropout p=0). Returns (output, p_attn)."""
    B, Lq, word_dim = query.shape
    Lk = key.shape[1]
    d_model = h * d_k

    def proj(x, w, b):
        L = x.shape[1]
        y = linear_pallas(x.reshape(B * L, word_dim), w, b)
        return y.reshape(B, L, h, d_k)       # head-interleaved layout; no transpose

    q = proj(query, params["wq"], params["bq"])
    k = proj(key, params["wk"], params["bk"])
    v = proj(value, params["wv"], params["bv"])

    mask4 = None
    if mask is not None:
        m = jnp.asarray(mask)
        if m.ndim == 2:                       # (Lq, Lk): shared across batch
            mask4 = m.reshape(1, 1, Lq, Lk)
        elif m.ndim == 3:                     # (B or 1, Lq, Lk): torch pre-unsqueeze
            mask4 = m.reshape(m.shape[0], 1, Lq, Lk)
        else:                                 # (B or 1, 1, Lq, Lk): already unsqueezed
            mask4 = m.reshape(m.shape[0], 1, Lq, Lk)
        mask4 = mask4.astype(jnp.int32)

    # TODO(synk): dropout on p_attn not implemented (module default p=0 / eval is identity).
    x, p_attn = scaled_dot_product_attention_pallas(q, k, v, mask=mask4)

    out = linear_pallas(x.reshape(B * Lq, d_model), params["wo"], params["bo"])
    return out.reshape(B, Lq, d_model), p_attn


# ---------------------------------------------------------------------------
if __name__ == "__main__":
    key0 = jax.random.PRNGKey(0)
    batch, seq, word_dim, h, d_k = 2, 8, 32, 4, 8
    d_model = h * d_k

    ks = jax.random.split(key0, 12)

    def init(k, shape):
        return jax.random.normal(k, shape, jnp.float32) * 0.1

    params = {
        "wq": init(ks[0], (d_model, word_dim)), "bq": init(ks[1], (d_model,)),
        "wk": init(ks[2], (d_model, word_dim)), "bk": init(ks[3], (d_model,)),
        "wv": init(ks[4], (d_model, word_dim)), "bv": init(ks[5], (d_model,)),
        "wo": init(ks[6], (d_model, d_model)),  "bo": init(ks[7], (d_model,)),
    }
    query = jax.random.normal(ks[8], (batch, seq, word_dim), jnp.float32)
    key_in = jax.random.normal(ks[9], (batch, seq, word_dim), jnp.float32)
    value = jax.random.normal(ks[10], (batch, seq, word_dim), jnp.float32)
    # Causal mask (1 = keep, 0 = masked), matching scores.masked_fill(mask == 0, -1e9).
    mask = jnp.tril(jnp.ones((seq, seq), jnp.int32))

    out, p_attn = multi_headed_attention_pallas(query, key_in, value, params, h, d_k, mask=mask)
    out = jax.block_until_ready(out)
    p_attn = jax.block_until_ready(p_attn)

    # Pure-JAX reference (same math as the PyTorch module).
    def ref_linear(x, w, b):
        return x @ w.T + b

    def ref_mha(q_in, k_in, v_in, msk):
        q = ref_linear(q_in, params["wq"], params["bq"]).reshape(batch, -1, h, d_k).transpose(0, 2, 1, 3)
        k = ref_linear(k_in, params["wk"], params["bk"]).reshape(batch, -1, h, d_k).transpose(0, 2, 1, 3)
        v = ref_linear(v_in, params["wv"], params["bv"]).reshape(batch, -1, h, d_k).transpose(0, 2, 1, 3)
        scores = q @ jnp.swapaxes(k, -2, -1) / math.sqrt(d_k)
        if msk is not None:
            scores = jnp.where(msk[:, None, :, :] == 0, -1e9, scores)
        p = jax.nn.softmax(scores, axis=-1)
        x = (p @ v).transpose(0, 2, 1, 3).reshape(batch, -1, d_model)
        return ref_linear(x, params["wo"], params["bo"]), p

    ref_out, ref_p = ref_mha(query, key_in, value, jnp.broadcast_to(mask, (batch, seq, seq)))
    assert jnp.allclose(out, ref_out, atol=1e-2, rtol=1e-2), "output mismatch vs reference"
    assert jnp.allclose(p_attn, ref_p, atol=1e-2, rtol=1e-2), "attn weights mismatch vs reference"

    # Also exercise the unmasked path (mask=None) once.
    out_nm, p_nm = multi_headed_attention_pallas(query, key_in, value, params, h, d_k, mask=None)
    jax.block_until_ready(out_nm)
    ref_out_nm, ref_p_nm = ref_mha(query, key_in, value, None)
    assert jnp.allclose(out_nm, ref_out_nm, atol=1e-2, rtol=1e-2), "unmasked output mismatch"
    assert jnp.allclose(p_nm, ref_p_nm, atol=1e-2, rtol=1e-2), "unmasked attn mismatch"

    print("KERNEL_OK")
</pallas_src>

<mosaic_0001>
module attributes {stable_mosaic.version = 11 : i64} {
  func.func @_linear_kernel(%arg0: i32, %arg1: i32, %arg2: memref<16x32xf32, #tpu.memory_space<vmem>>, %arg3: memref<32x32xf32, #tpu.memory_space<vmem>>, %arg4: memref<1x32xf32, #tpu.memory_space<vmem>>, %arg5: memref<16x32xf32, #tpu.memory_space<vmem>>, %arg6: memref<16x32xf32, #tpu.memory_space<vmem>>) attributes {dimension_semantics = [#tpu.dimension_semantics<parallel>, #tpu.dimension_semantics<arbitrary>], iteration_bounds = array<i64: 1, 1>, scalar_prefetch = 0 : i64, scratch_operands = 1 : i64, tpu.core_type = #tpu.core_type<tc>, window_params = [{transform_indices = @transform_0, window_bounds = array<i64: 16, 32>}, {transform_indices = @transform_1, window_bounds = array<i64: 32, 32>}, {pipeline_mode = #tpu.pipeline_mode<synchronous>, transform_indices = @transform_2, window_bounds = array<i64: 1, 32>}, {transform_indices = @transform_3, window_bounds = array<i64: 16, 32>}]} {
    %c0_i32 = arith.constant 0 : i32
    %0 = arith.cmpi eq, %arg1, %c0_i32 : i32
    %1 = arith.extui %0 : i1 to i32
    %c0_i32_0 = arith.constant 0 : i32
    %2 = arith.cmpi ne, %1, %c0_i32_0 : i32
    scf.if %2 {
      %cst_10 = arith.constant 0.000000e+00 : f32
      %12 = vector.broadcast %cst_10 : f32 to vector<16x32xf32>
      %c0_11 = arith.constant 0 : index
      %c0_12 = arith.constant 0 : index
      %13 = vector.load %arg6[%c0_11, %c0_12] : memref<16x32xf32, #tpu.memory_space<vmem>>, vector<16x32xf32>
      tpu.vector_store %arg6[%c0_11, %c0_12], %12 {strides = array<i32>} : memref<16x32xf32, #tpu.memory_space<vmem>>, vector<16x32xf32>,
    } else {
    }
    %c0 = arith.constant 0 : index
    %c0_1 = arith.constant 0 : index
    %3 = vector.load %arg6[%c0, %c0_1] : memref<16x32xf32, #tpu.memory_space<vmem>>, vector<16x32xf32>
    %c0_2 = arith.constant 0 : index
    %c0_3 = arith.constant 0 : index
    %4 = vector.load %arg2[%c0_2, %c0_3] : memref<16x32xf32, #tpu.memory_space<vmem>>, vector<16x32xf32>
    %c0_4 = arith.constant 0 : index
    %c0_5 = arith.constant 0 : index
    %5 = vector.load %arg3[%c0_4, %c0_5] : memref<32x32xf32, #tpu.memory_space<vmem>>, vector<32x32xf32>
    %cst = arith.constant dense<0.000000e+00> : vector<16x32xf32>
    %6 = tpu.matmul %4, %5, %cst {dimension_numbers = #tpu.dot_dimension_numbers<[1], [1], [0], [0], [0, 0, 1, 0], [], []>} : vector<16x32xf32>, vector<32x32xf32>, vector<16x32xf32> -> vector<16x32xf32>
    %7 = arith.addf %3, %6 : vector<16x32xf32>
    %c0_6 = arith.constant 0 : index
    %c0_7 = arith.constant 0 : index
    %8 = vector.load %arg6[%c0_6, %c0_7] : memref<16x32xf32, #tpu.memory_space<vmem>>, vector<16x32xf32>
    tpu.vector_store %arg6[%c0_6, %c0_7], %7 {strides = array<i32>} : memref<16x32xf32, #tpu.memory_space<vmem>>, vector<16x32xf32>,
    %c0_i32_8 = arith.constant 0 : i32
    %9 = arith.cmpi eq, %arg1, %c0_i32_8 : i32
    %10 = arith.extui %9 : i1 to i32
    %c0_i32_9 = arith.constant 0 : i32
    %11 = arith.cmpi ne, %10, %c0_i32_9 : i32
    scf.if %11 {
      %c0_10 = arith.constant 0 : index
      %c0_11 = arith.constant 0 : index
      %12 = vector.load %arg6[%c0_10, %c0_11] : memref<16x32xf32, #tpu.memory_space<vmem>>, vector<16x32xf32>
      %c0_12 = arith.constant 0 : index
      %c0_13 = arith.constant 0 : index
      %13 = vector.load %arg4[%c0_12, %c0_13] : memref<1x32xf32, #tpu.memory_space<vmem>>, vector<1x32xf32>
      %14 = vector.broadcast %13 : vector<1x32xf32> to vector<16x32xf32>
      %15 = arith.addf %12, %14 : vector<16x32xf32>
      %c0_14 = arith.constant 0 : index
      %c0_15 = arith.constant 0 : index
      %16 = vector.load %arg5[%c0_14, %c0_15] : memref<16x32xf32, #tpu.memory_space<vmem>>, vector<16x32xf32>
      tpu.vector_store %arg5[%c0_14, %c0_15], %15 {strides = array<i32>} : memref<16x32xf32, #tpu.memory_space<vmem>>, vector<16x32xf32>,
    } else {
    }
    return
  }
  func.func @transform_0(%arg0: i32, %arg1: i32) -> (i32, i32) {
    %c0_i32 = arith.constant 0 : i32
    return %arg0, %arg1 : i32, i32
  }
  func.func @transform_1(%arg0: i32, %arg1: i32) -> (i32, i32) {
    %c0_i32 = arith.constant 0 : i32
    %c0_i32_0 = arith.constant 0 : i32
    return %c0_i32, %arg1 : i32, i32
  }
  func.func @transform_2(%arg0: i32, %arg1: i32) -> (i32, i32) {
    %c0_i32 = arith.constant 0 : i32
    %c0_i32_0 = arith.constant 0 : i32
    %c0_i32_1 = arith.constant 0 : i32
    return %c0_i32, %c0_i32_0 : i32, i32
  }
  func.func @transform_3(%arg0: i32, %arg1: i32) -> (i32, i32) {
    %c0_i32 = arith.constant 0 : i32
    %c0_i32_0 = arith.constant 0 : i32
    return %arg0, %c0_i32 : i32, i32
  }
}

</mosaic_0001>

<llo_original>
// kernel: tpu_custom_call.1
$region0: #{tpu_custom_call.1}
  #allocation0 [shape = 'u32[]', space=smem, size = 0x4, offset = 0x4, fixed_abs, tag = 'smem constant byte address 0x4 - core index']
  #allocation1 [shape = 'u32[72,128]{1,0:T(1,128)}', space=vmem, size = 0x9000, scoped, tag = 'internal scratch']
  #allocation2 [shape = 'f32[16,32]{1,0:T(8,128)}', space=vmem, size = 0x2000, scoped, tag = 'scratch operand']
  %s0 = inlined_call_operand.hbm [shape: f32[16,32], index: 0, kind: input, shape index: {}]
  %s1 = inlined_call_operand.hbm [shape: f32[32,32], index: 1, kind: input, shape index: {}]
  %s2 = inlined_call_operand.vmem [shape: f32[1,32], index: 2, kind: input, shape index: {}]
  %s3 = inlined_call_operand.hbm [shape: f32[16,32], index: 3, kind: output, shape index: {}]
  %s4 = sld [smem:[#allocation0]]
  $region38: #{tpu_custom_call.1} parent=0
    _
  %s6 = ssub.s32 1, %s4
  %s7 = scalar_select 0, %s6, %s4
  $region1: #{tpu_custom_call.1} parent=0
    #allocation3 [shape = 'u8[8192]{0}', space=vmem, size = 0x2000, scoped, tag = 'input window, operand 0, single buffered']
    #allocation4 [shape = 's32[1]{0}', space=sflag, size = 0x4, scoped, tag = 'scoped memory for tpu_custom_call.1']
    #allocation5 [shape = 's32[1]{0}', space=sflag, size = 0x4, scoped, tag = 'scoped memory for tpu_custom_call.1']
    #allocation6 [shape = 'u8[16384]{0}', space=vmem, size = 0x4000, scoped, tag = 'input window, operand 1, single buffered']
    #allocation7 [shape = 's32[1]{0}', space=sflag, size = 0x4, scoped, tag = 'scoped memory for tpu_custom_call.1']
    #allocation8 [shape = 'u8[8192]{0}', space=vmem, size = 0x2000, scoped, tag = 'output window, operand 0, single buffered']
    %8 = vsyncpa [#allocation4], 0
    %9 = vsyncpa [#allocation7], 0
    %10 = vsyncpa [#allocation5], 0
    // Predicated region
    $region2: #{tpu_custom_call.1} parent=1 // pred_check
      _
    $region3: #{tpu_custom_call.1} parent=1 // pred_check_branch
      %12 = sbr.rel (0) target = $region5
    $region4: #{tpu_custom_call.1} parent=1 // pred_region
      %14 = vsyncadd [#allocation4], 0
      %s15 = sshll.u32 %s0, 4
      %s16 = int_to_ptr.hbm [resolvable:$true] %s15
      %s17 = sshll.u32 [#allocation3], 4
      %s18 = int_to_ptr.vmem [resolvable:$true] %s17
      %23 = dma.hbm_to_vmem [thread:$0]  %s16, 256, %s18, [#allocation4], 128, 128, 8
    $region5: #{tpu_custom_call.1} parent=1 // pred_fallthru
      _
    // Predicated region
    $region6: #{tpu_custom_call.1} parent=1 // pred_check
      _
    $region7: #{tpu_custom_call.1} parent=1 // pred_check_branch
      %25 = sbr.rel (0) target = $region9
    $region8: #{tpu_custom_call.1} parent=1 // pred_region
      %27 = vsyncadd [#allocation7], 0
      %s28 = sshll.u32 %s1, 4
      %s29 = int_to_ptr.hbm [resolvable:$true] %s28
      %s30 = sshll.u32 [#allocation6], 4
      %s31 = int_to_ptr.vmem [resolvable:$true] %s30
      %36 = dma.hbm_to_vmem [thread:$0]  %s29, 512, %s31, [#allocation7], 128, 128, 8
    $region9: #{tpu_custom_call.1} parent=1 // pred_fallthru
      _
    // Predicated region
    $region10: #{tpu_custom_call.1} parent=1 // pred_check
      _
    $region11: #{tpu_custom_call.1} parent=1 // pred_check_branch
      %38 = sbr.rel (0) target = $region13
    $region12: #{tpu_custom_call.1} parent=1 // pred_region
      _
    $region13: #{tpu_custom_call.1} parent=1 // pred_fallthru
      _
    // Predicated region
    $region14: #{tpu_custom_call.1} parent=1 // pred_check
      _
    $region15: #{tpu_custom_call.1} parent=1 // pred_check_branch
      %40 = sbr.rel (0) target = $region17
    $region16: #{tpu_custom_call.1} parent=1 // pred_region
      %42 = dma.done [#allocation4], 256
    $region17: #{tpu_custom_call.1} parent=1 // pred_fallthru
      _
    // Predicated region
    $region18: #{tpu_custom_call.1} parent=1 // pred_check
      _
    $region19: #{tpu_custom_call.1} parent=1 // pred_check_branch
      %44 = sbr.rel (0) target = $region21
    $region20: #{tpu_custom_call.1} parent=1 // pred_region
      %46 = dma.done [#allocation7], 512
    $region21: #{tpu_custom_call.1} parent=1 // pred_fallthru
      _
    %p47 = scmp.eq.s32.totalorder 0, 0
    // Predicated region
    $region22: #{tpu_custom_call.1} parent=1 // pred_check
      %p48 = pneg %p47
    $region23: #{tpu_custom_call.1} parent=1 // pred_check_branch
      %50 = sbr.rel (%p48) target = $region25
    $region24: #{tpu_custom_call.1} parent=1 // pred_region
      %vm51 = vcmask 261120
      %52 = vst.msk [vmem:[#allocation2] sm:$0xff] %vm51, 0.0
      %53 = vst.msk [vmem:[#allocation2 + $0x8] sm:$0xff] %vm51, 0.0
    $region25: #{tpu_custom_call.1} parent=1 // pred_fallthru
      _
    %v54 = vld [vmem:[#allocation2] sm:$0xff]
    %v55 = vld [vmem:[#allocation2 + $0x8] sm:$0xff]
    %v56 = vld [vmem:[#allocation3] sm:$0xff]
    %v57 = vld [vmem:[#allocation3 + $0x8] sm:$0xff]
    %v58 = vld [vmem:[#allocation6] sm:$0xff]
    %v59 = vld [vmem:[#allocation6 + $0x8] sm:$0xff]
    %v60 = vld [vmem:[#allocation6 + $0x10] sm:$0xff]
    %v61 = vld [vmem:[#allocation6 + $0x18] sm:$0xff]
    %vm62 = vcmask 261120
    %v64 = vsel %vm62, %v56, 0
    %v67 = vsel %vm62, %v57, 0
    %v70 = vsel %vm62, %v58, 0
    %v73 = vsel %vm62, %v59, 0
    %v76 = vsel %vm62, %v60, 0
    %v79 = vsel %vm62, %v61, 0
    %81 = vmatpush.xpose.msra.mxu0 0.0
    %82 = vmatpush.xpose.msra.mxu0 0.0
    %83 = vmatpush.xpose.msra.mxu0 0.0
    %84 = vmatpush.xpose.msra.mxu0 0.0
    %85 = vmatpush.xpose.msra.mxu0 0.0
    %86 = vmatpush.xpose.msra.mxu0 0.0
    %87 = vmatpush.xpose.msra.mxu0 0.0
    %88 = vmatpush.xpose.msra.mxu0 0.0
    %89 = vmatpush.xpose.msra.mxu0 0.0
    %90 = vmatpush.xpose.msra.mxu0 0.0
    %91 = vmatpush.xpose.msra.mxu0 0.0
    %92 = vmatpush.xpose.msra.mxu0 0.0
    %93 = vmatpush.xpose.msra.mxu0 %v79
    %94 = vmatpush.xpose.msra.mxu0 %v76
    %95 = vmatpush.xpose.msra.mxu0 %v73
    %96 = vmatpush.xpose.msra.mxu0 %v70
    %97 = vmatmul.f32.gmra.mxu0 %v64
    %v98 = vpop.f32.mrf.mxu0
    %v99 = vadd.f32 0.0, %v98
    %100 = vmatmul.f32.gmra.mxu0 %v67
    %v101 = vpop.f32.mrf.mxu0
    %v102 = vadd.f32 0.0, %v101
    %103 = vdwg.mxu0
    %v104 = vadd.f32 %v54, %v99
    %v105 = vadd.f32 %v55, %v102
    %106 = vst.msk [vmem:[#allocation2] sm:$0xff] %vm62, %v104
    %107 = vst.msk [vmem:[#allocation2 + $0x8] sm:$0xff] %vm62, %v105
    // Predicated region
    $region26: #{tpu_custom_call.1} parent=1 // pred_check
      %p108 = pneg %p47
    $region27: #{tpu_custom_call.1} parent=1 // pred_check_branch
      %110 = sbr.rel (%p108) target = $region29
    $region28: #{tpu_custom_call.1} parent=1 // pred_region
      %v111 = vld [vmem:[#allocation2] sm:$0xff]
      %v112 = vld [vmem:[#allocation2 + $0x8] sm:$0xff]
      %v113 = vld [vmem:[%s2] sm:$0x1]
      %v115 = vperm.slane %v113, 0
      %v117 = vadd.f32 %v111, %v115
      %v118 = vadd.f32 %v112, %v115
      %119 = vst.msk [vmem:[#allocation8] sm:$0xff] %vm62, %v117
      %120 = vst.msk [vmem:[#allocation8 + $0x8] sm:$0xff] %vm62, %v118
    $region29: #{tpu_custom_call.1} parent=1 // pred_fallthru
      _
    // Predicated region
    $region30: #{tpu_custom_call.1} parent=1 // pred_check
      _
    $region31: #{tpu_custom_call.1} parent=1 // pred_check_branch
      %122 = sbr.rel (0) target = $region33
    $region32: #{tpu_custom_call.1} parent=1 // pred_region
      %124 = vsyncadd [#allocation5], 0
      %s125 = sshll.u32 [#allocation8], 4
      %s126 = int_to_ptr.vmem [resolvable:$true] %s125
      %s127 = sshll.u32 %s3, 4
      %s128 = int_to_ptr.hbm [resolvable:$true] %s127
      %133 = dma.vmem_to_hbm [thread:$0]  %s126, 256, %s128, [#allocation5], 128, 128, 8
    $region33: #{tpu_custom_call.1} parent=1 // pred_fallthru
      _
    // Predicated region
    $region34: #{tpu_custom_call.1} parent=1 // pred_check
      _
    $region35: #{tpu_custom_call.1} parent=1 // pred_check_branch
      %135 = sbr.rel (0) target = $region37
    $region36: #{tpu_custom_call.1} parent=1 // pred_region
      %137 = dma.done [#allocation5], 256
    $region37: #{tpu_custom_call.1} parent=1 // pred_fallthru
      _
    %138 = vsyncpa [#allocation4], 1
    %139 = vsyncpa [#allocation7], 1
    %140 = vsyncpa [#allocation5], 1

</llo_original>
